<compile_context>
chip_gen: v7x
topology: tpu7x:2x2x1
jax: 0.10.0
libtpu: 0.0.40
codegen_flags: <defaults>
</compile_context>

<pallas_src>
import jax
import jax.numpy as jnp
from jax import lax
from jax.experimental import pallas as pl
from jax.experimental.pallas import tpu as pltpu


def _concat_head_kernel(x_ref, w1_ref, b1_ref, wh_ref, bh_ref, out_ref, acc_ref):
    # x_ref  : [1, C, tS]   one batch row, one spatial tile (NCHW, spatial flat)
    # w1_ref : [C, F]       1x1-conv weight
    # b1_ref : [1, F]       1x1-conv bias
    # wh_ref : [F, Kpad]    fused heads (wa|wb), pre-scaled by 1/S, zero-padded
    # bh_ref : [1, Kpad]    fused head bias (zero-padded)
    # out_ref: [1, 1, Kpad] lane-dense output slab
    # acc_ref: [1, F] f32   running spatial sum of ReLU(conv) for this batch row
    s_idx = pl.program_id(1)

    @pl.when(s_idx == 0)
    def _init():
        acc_ref[...] = jnp.zeros_like(acc_ref)

    # 1x1 conv == channel matmul: contract over C (lhs dim 0 -> trans-A MXU
    # matmul), so the NCHW activation is consumed directly, no transpose.
    x = x_ref[0]                                            # [C, tS]
    feats = lax.dot_general(
        x, w1_ref[...],
        dimension_numbers=(((0,), (0,)), ((), ())),
        preferred_element_type=jnp.float32,
    )                                                       # [tS, F]
    feats = jnp.maximum(feats + b1_ref[...], 0.0)           # bias + ReLU (VPU)
    # Spatial partial sum (XLU reduce, overlaps with MXU/VPU slots).
    acc_ref[...] += jnp.sum(feats, axis=0, keepdims=True)

    @pl.when(s_idx == pl.num_programs(1) - 1)
    def _finalize():
        # Both heads fused in one matmul; the 1/S of the global-average-pool is
        # folded into wh, so the accumulated SUM feeds the MXU directly.
        logits = jnp.dot(acc_ref[...], wh_ref[...],
                         preferred_element_type=jnp.float32) + bh_ref[...]
        out_ref[0] = logits.astype(out_ref.dtype)


def _pick_spatial_tile(S, tile_s):
    """Largest multiple of 128 that divides S and is <= tile_s (else full S)."""
    if S % 128 != 0:
        return S
    ts = max(128, (min(tile_s, S) // 128) * 128)
    while S % ts != 0:
        ts -= 128
    return ts


def concat_output_wrapper_forward(x_nchw, params, *, tile_s=512):
    """Equivalent of ConcatOutputWrapper(model)(x) == model(x)['cls_con'].

    x_nchw: [B, C, H, W] (PyTorch layout).  Returns [B, K1+K2].
    """
    w1, b1 = params["w1"], params["b1"]
    wa, ba, wb, bb = params["wa"], params["ba"], params["wb"], params["bb"]
    B, C, H, W = x_nchw.shape
    S = H * W
    F = w1.shape[1]
    K = wa.shape[1] + wb.shape[1]

    # Free reshape (no HBM round trip) — replaces an explicit transpose.
    x = x_nchw.reshape(B, C, S)

    # Fuse the two heads, fold the 1/S of the average pool into the weights,
    # and zero-pad to a lane-dense (multiple of 128) output width.
    Kpad = ((K + 127) // 128) * 128
    wh = jnp.concatenate([wa, wb], axis=1).astype(jnp.float32) * (1.0 / S)
    bh = jnp.concatenate([ba, bb], axis=1).astype(jnp.float32)
    wh = jnp.pad(wh, ((0, 0), (0, Kpad - K)))
    bh = jnp.pad(bh, ((0, 0), (0, Kpad - K)))

    ts = _pick_spatial_tile(S, tile_s)
    grid = (B, S // ts)  # batch = parallel (v7x megacore), spatial = reduction

    out = pl.pallas_call(
        _concat_head_kernel,
        out_shape=jax.ShapeDtypeStruct((B, 1, Kpad), jnp.float32),
        grid_spec=pltpu.PrefetchScalarGridSpec(
            num_scalar_prefetch=0,
            grid=grid,
            in_specs=[
                pl.BlockSpec((1, C, ts), lambda b, s: (b, 0, s)),
                pl.BlockSpec((C, F), lambda b, s: (0, 0)),
                pl.BlockSpec((1, F), lambda b, s: (0, 0)),
                pl.BlockSpec((F, Kpad), lambda b, s: (0, 0)),
                pl.BlockSpec((1, Kpad), lambda b, s: (0, 0)),
            ],
            out_specs=pl.BlockSpec((1, 1, Kpad), lambda b, s: (b, 0, 0)),
            scratch_shapes=[pltpu.VMEM((1, F), jnp.float32)],
        ),
        compiler_params=pltpu.CompilerParams(
            dimension_semantics=("parallel", "arbitrary"),
        ),
    )(x, w1, b1, wh, bh)

    return out.reshape(B, Kpad)[:, :K]


def make_params(key, C, F, K1, K2):
    k1, k2, k3, k4, k5, k6 = jax.random.split(key, 6)
    scale1 = 1.0 / jnp.sqrt(C)
    scale2 = 1.0 / jnp.sqrt(F)
    return {
        "w1": jax.random.normal(k1, (C, F), jnp.float32) * scale1,
        "b1": jax.random.normal(k2, (1, F), jnp.float32) * 0.01,
        "wa": jax.random.normal(k3, (F, K1), jnp.float32) * scale2,
        "ba": jax.random.normal(k4, (1, K1), jnp.float32) * 0.01,
        "wb": jax.random.normal(k5, (F, K2), jnp.float32) * scale2,
        "bb": jax.random.normal(k6, (1, K2), jnp.float32) * 0.01,
    }


def _reference(x_nchw, params):
    # Pure-JAX reference of the same synthetic model (sanity check).
    B, C, H, W = x_nchw.shape
    x = jnp.transpose(x_nchw, (0, 2, 3, 1)).reshape(B, H * W, C)
    feats = jnp.maximum(
        jnp.einsum("bsc,cf->bsf", x, params["w1"]) + params["b1"][None], 0.0
    )
    pooled = jnp.mean(feats, axis=1)
    la = pooled @ params["wa"] + params["ba"]
    lb = pooled @ params["wb"] + params["bb"]
    return jnp.concatenate([la, lb], axis=-1)


if __name__ == "__main__":
    key = jax.random.PRNGKey(0)
    kx, kp = jax.random.split(key)

    B, C, H, W = 2, 4, 16, 16
    F, K1, K2 = 32, 8, 8

    x = jax.random.normal(kx, (B, C, H, W), jnp.float32)
    params = make_params(kp, C, F, K1, K2)

    # tile_s=128 -> 2 spatial tiles per batch row; exercises the accumulate /
    # finalize path across grid iterations.
    out = concat_output_wrapper_forward(x, params, tile_s=128)
    out = jax.block_until_ready(out)

    ref = _reference(x, params)
    assert out.shape == (B, K1 + K2)
    assert jnp.allclose(out, ref, atol=1e-4, rtol=1e-4)

    print("KERNEL_OK")
</pallas_src>

<mosaic_0001>
module attributes {stable_mosaic.version = 11 : i64} {
  func.func @_concat_head_kernel(%arg0: i32, %arg1: i32, %arg2: memref<1x4x128xf32, #tpu.memory_space<vmem>>, %arg3: memref<4x32xf32, #tpu.memory_space<vmem>>, %arg4: memref<1x32xf32, #tpu.memory_space<vmem>>, %arg5: memref<32x128xf32, #tpu.memory_space<vmem>>, %arg6: memref<1x128xf32, #tpu.memory_space<vmem>>, %arg7: memref<1x1x128xf32, #tpu.memory_space<vmem>>, %arg8: memref<1x32xf32, #tpu.memory_space<vmem>>) attributes {dimension_semantics = [#tpu.dimension_semantics<parallel>, #tpu.dimension_semantics<arbitrary>], iteration_bounds = array<i64: 2, 2>, scalar_prefetch = 0 : i64, scratch_operands = 1 : i64, tpu.core_type = #tpu.core_type<tc>, window_params = [{transform_indices = @transform_0, window_bounds = array<i64: 1, 4, 128>}, {pipeline_mode = #tpu.pipeline_mode<synchronous>, transform_indices = @transform_1, window_bounds = array<i64: 4, 32>}, {pipeline_mode = #tpu.pipeline_mode<synchronous>, transform_indices = @transform_2, window_bounds = array<i64: 1, 32>}, {pipeline_mode = #tpu.pipeline_mode<synchronous>, transform_indices = @transform_3, window_bounds = array<i64: 32, 128>}, {pipeline_mode = #tpu.pipeline_mode<synchronous>, transform_indices = @transform_4, window_bounds = array<i64: 1, 128>}, {transform_indices = @transform_5, window_bounds = array<i64: 1, 1, 128>}]} {
    %c0_i32 = arith.constant 0 : i32
    %0 = arith.cmpi eq, %arg1, %c0_i32 : i32
    %1 = arith.extui %0 : i1 to i32
    %c0_i32_0 = arith.constant 0 : i32
    %2 = arith.cmpi ne, %1, %c0_i32_0 : i32
    scf.if %2 {
      %cst_14 = arith.constant 0.000000e+00 : f32
      %20 = vector.broadcast %cst_14 : f32 to vector<1x32xf32>
      %c0_15 = arith.constant 0 : index
      %c0_16 = arith.constant 0 : index
      %21 = vector.load %arg8[%c0_15, %c0_16] : memref<1x32xf32, #tpu.memory_space<vmem>>, vector<1x32xf32>
      tpu.vector_store %arg8[%c0_15, %c0_16], %20 {strides = array<i32>} : memref<1x32xf32, #tpu.memory_space<vmem>>, vector<1x32xf32>,
    } else {
    }
    %c0 = arith.constant 0 : index
    %c0_1 = arith.constant 0 : index
    %c0_2 = arith.constant 0 : index
    %3 = vector.load %arg2[%c0, %c0_1, %c0_2] : memref<1x4x128xf32, #tpu.memory_space<vmem>>, vector<1x4x128xf32>
    %4 = vector.shape_cast %3 : vector<1x4x128xf32> to vector<4x128xf32>
    %c0_3 = arith.constant 0 : index
    %c0_4 = arith.constant 0 : index
    %5 = vector.load %arg3[%c0_3, %c0_4] : memref<4x32xf32, #tpu.memory_space<vmem>>, vector<4x32xf32>
    %cst = arith.constant dense<0.000000e+00> : vector<128x32xf32>
    %6 = tpu.matmul %4, %5, %cst {dimension_numbers = #tpu.dot_dimension_numbers<[0], [0], [1], [1], [0, 1, 1, 1], [], []>} : vector<4x128xf32>, vector<4x32xf32>, vector<128x32xf32> -> vector<128x32xf32>
    %c0_5 = arith.constant 0 : index
    %c0_6 = arith.constant 0 : index
    %7 = vector.load %arg4[%c0_5, %c0_6] : memref<1x32xf32, #tpu.memory_space<vmem>>, vector<1x32xf32>
    %8 = vector.broadcast %7 : vector<1x32xf32> to vector<128x32xf32>
    %9 = arith.addf %6, %8 : vector<128x32xf32>
    %cst_7 = arith.constant 0.000000e+00 : f32
    %10 = vector.broadcast %cst_7 : f32 to vector<128x32xf32>
    %11 = arith.maximumf %9, %10 : vector<128x32xf32>
    %c0_8 = arith.constant 0 : index
    %c0_9 = arith.constant 0 : index
    %12 = vector.load %arg8[%c0_8, %c0_9] : memref<1x32xf32, #tpu.memory_space<vmem>>, vector<1x32xf32>
    %cst_10 = arith.constant dense<0.000000e+00> : vector<32xf32>
    %13 = vector.multi_reduction <add>, %11, %cst_10 [0] : vector<128x32xf32> to vector<32xf32>
    %14 = vector.shape_cast %13 : vector<32xf32> to vector<1x32xf32>
    %15 = arith.addf %12, %14 : vector<1x32xf32>
    %c0_11 = arith.constant 0 : index
    %c0_12 = arith.constant 0 : index
    %16 = vector.load %arg8[%c0_11, %c0_12] : memref<1x32xf32, #tpu.memory_space<vmem>>, vector<1x32xf32>
    tpu.vector_store %arg8[%c0_11, %c0_12], %15 {strides = array<i32>} : memref<1x32xf32, #tpu.memory_space<vmem>>, vector<1x32xf32>,
    %c1_i32 = arith.constant 1 : i32
    %17 = arith.cmpi eq, %arg1, %c1_i32 : i32
    %18 = arith.extui %17 : i1 to i32
    %c0_i32_13 = arith.constant 0 : i32
    %19 = arith.cmpi ne, %18, %c0_i32_13 : i32
    scf.if %19 {
      %c0_14 = arith.constant 0 : index
      %c0_15 = arith.constant 0 : index
      %20 = vector.load %arg8[%c0_14, %c0_15] : memref<1x32xf32, #tpu.memory_space<vmem>>, vector<1x32xf32>
      %c0_16 = arith.constant 0 : index
      %c0_17 = arith.constant 0 : index
      %21 = vector.load %arg5[%c0_16, %c0_17] : memref<32x128xf32, #tpu.memory_space<vmem>>, vector<32x128xf32>
      %cst_18 = arith.constant dense<0.000000e+00> : vector<1x128xf32>
      %22 = tpu.matmul %20, %21, %cst_18 {dimension_numbers = #tpu.dot_dimension_numbers<[1], [0], [0], [1], [0, 0, 1, 1], [], []>} : vector<1x32xf32>, vector<32x128xf32>, vector<1x128xf32> -> vector<1x128xf32>
      %c0_19 = arith.constant 0 : index
      %c0_20 = arith.constant 0 : index
      %23 = vector.load %arg6[%c0_19, %c0_20] : memref<1x128xf32, #tpu.memory_space<vmem>>, vector<1x128xf32>
      %24 = arith.addf %22, %23 : vector<1x128xf32>
      %c0_21 = arith.constant 0 : index
      %c0_22 = arith.constant 0 : index
      %c0_23 = arith.constant 0 : index
      %25 = vector.load %arg7[%c0_21, %c0_22, %c0_23] : memref<1x1x128xf32, #tpu.memory_space<vmem>>, vector<1x1x128xf32>
      %26 = vector.shape_cast %25 : vector<1x1x128xf32> to vector<1x128xf32>
      %27 = vector.shape_cast %24 : vector<1x128xf32> to vector<1x1x128xf32>
      tpu.vector_store %arg7[%c0_21, %c0_22, %c0_23], %27 {strides = array<i32>} : memref<1x1x128xf32, #tpu.memory_space<vmem>>, vector<1x1x128xf32>,
    } else {
    }
    return
  }
  func.func @transform_0(%arg0: i32, %arg1: i32) -> (i32, i32, i32) {
    %c0_i32 = arith.constant 0 : i32
    %c0_i32_0 = arith.constant 0 : i32
    return %arg0, %c0_i32, %arg1 : i32, i32, i32
  }
  func.func @transform_1(%arg0: i32, %arg1: i32) -> (i32, i32) {
    %c0_i32 = arith.constant 0 : i32
    %c0_i32_0 = arith.constant 0 : i32
    %c0_i32_1 = arith.constant 0 : i32
    return %c0_i32, %c0_i32_0 : i32, i32
  }
  func.func @transform_2(%arg0: i32, %arg1: i32) -> (i32, i32) {
    %c0_i32 = arith.constant 0 : i32
    %c0_i32_0 = arith.constant 0 : i32
    %c0_i32_1 = arith.constant 0 : i32
    return %c0_i32, %c0_i32_0 : i32, i32
  }
  func.func @transform_3(%arg0: i32, %arg1: i32) -> (i32, i32) {
    %c0_i32 = arith.constant 0 : i32
    %c0_i32_0 = arith.constant 0 : i32
    %c0_i32_1 = arith.constant 0 : i32
    return %c0_i32, %c0_i32_0 : i32, i32
  }
  func.func @transform_4(%arg0: i32, %arg1: i32) -> (i32, i32) {
    %c0_i32 = arith.constant 0 : i32
    %c0_i32_0 = arith.constant 0 : i32
    %c0_i32_1 = arith.constant 0 : i32
    return %c0_i32, %c0_i32_0 : i32, i32
  }
  func.func @transform_5(%arg0: i32, %arg1: i32) -> (i32, i32, i32) {
    %c0_i32 = arith.constant 0 : i32
    %c0_i32_0 = arith.constant 0 : i32
    %c0_i32_1 = arith.constant 0 : i32
    return %arg0, %c0_i32, %c0_i32_0 : i32, i32, i32
  }
}

</mosaic_0001>

<llo_original>
// kernel: tpu_custom_call.1
$region0: #{tpu_custom_call.1}
  #allocation0 [shape = 'u32[]', space=smem, size = 0x4, offset = 0x4, fixed_abs, tag = 'smem constant byte address 0x4 - core index']
  #allocation1 [shape = 'u32[144,128]{1,0:T(1,128)}', space=vmem, size = 0x12000, scoped, tag = 'internal scratch']
  #allocation2 [shape = 'f32[1,32]{1,0:T(1,128)}', space=vmem, size = 0x200, scoped, tag = 'scratch operand']
  %s0 = inlined_call_operand.hbm [shape: f32[2,4,256], index: 0, kind: input, shape index: {}]
  %s1 = inlined_call_operand.hbm [shape: f32[4,32], index: 1, kind: input, shape index: {}]
  %s2 = inlined_call_operand.vmem [shape: f32[1,32], index: 2, kind: input, shape index: {}]
  %s3 = inlined_call_operand.hbm [shape: f32[32,128], index: 3, kind: input, shape index: {}]
  %s4 = inlined_call_operand.vmem [shape: f32[1,128], index: 4, kind: input, shape index: {}]
  %s5 = inlined_call_operand.hbm [shape: f32[2,1,128], index: 5, kind: output, shape index: {}]
  %s6 = sld [smem:[#allocation0]]
  $region73: #{tpu_custom_call.1} parent=0
    _
  %s8 = ssub.s32 1, %s6
  %s9 = scalar_select 0, %s8, %s6
  $region1: #{tpu_custom_call.1} parent=0
    #allocation3 [shape = 'u8[4096]{0}', space=vmem, size = 0x1000, scoped, tag = 'input window, operand 0']
    #allocation4 [shape = 's32[2]{0}', space=sflag, size = 0x8, scoped, tag = 'scoped memory for tpu_custom_call.1']
    #allocation5 [shape = 's32[2]{0}', space=sflag, size = 0x8, scoped, tag = 'scoped memory for tpu_custom_call.1']
    #allocation6 [shape = 'u8[2048]{0}', space=vmem, size = 0x800, scoped, tag = 'input window, operand 1, single buffered']
    #allocation7 [shape = 's32[1]{0}', space=sflag, size = 0x4, scoped, tag = 'scoped memory for tpu_custom_call.1']
    #allocation8 [shape = 'u8[16384]{0}', space=vmem, size = 0x4000, scoped, tag = 'input window, operand 3, single buffered']
    #allocation9 [shape = 'u8[1024]{0}', space=vmem, size = 0x400, scoped, tag = 'output window, operand 0']
    %10 = vsyncpa [#allocation4], 0
    %s11 = scalar_lea.sflag [#allocation4], 1
    %12 = vsyncpa %s11, 0
    %13 = vsyncpa [#allocation7], 0
    %14 = vsyncpa [#allocation5], 0
    %s15 = scalar_lea.sflag [#allocation5], 1
    %16 = vsyncpa %s15, 0
    loop: start=0, step=1, limit=6
    $region2: #{tpu_custom_call.1} parent=1 // loop_pre_header
      _
    $region3: #{tpu_custom_call.1} parent=1 // loop_header
      %s18 = sphi 0, %s22
      %p19 = scmp.ge.s32.totalorder %s18, 6
      %s25 = sphi 0, %s37
      %s26 = sphi 0, %s33
      %s27 = sphi 0, %s25
      %s28 = sphi 0, %s26
      %s29 = sphi 0, %s27
      %s30 = sphi 0, %s28
      %s42 = sphi 0, %s44
      %s45 = sphi 0, %s42
      %s46 = sphi 0, %s45
      %s62 = sphi 0, %s46
      %s66 = sphi 0, %s66
      %s68 = sphi 0, %s66
      %s69 = sphi 0, %s68
      %s83 = sphi 0, %s69
      %s87 = sphi 0, %s87
      %s89 = sphi 0, %s87
      %s90 = sphi 0, %s89
      %s104 = sphi 0, %s90
      %s108 = sphi 0, %s108
      %s110 = sphi 0, %s108
      %s111 = sphi 0, %s110
      %s125 = sphi 0, %s111
      %s129 = sphi 0, %s129
      %s131 = sphi 0, %s129
      %s132 = sphi 0, %s131
      %s146 = sphi 0, %s132
      %s152 = sphi 0, %s154
      %s155 = sphi 0, %s152
      %s156 = sphi 0, %s155
      %s172 = sphi 0, %s156
    $region4: #{tpu_custom_call.1} parent=1 // loop_header_branch
      %21 = sbr.rel (%p19) target = $region8
    $region5: #{tpu_custom_call.1} parent=1 // loop_body
      %s23 = ssub.s32 %s18, 1
      %s24 = ssub.s32 %s18, 2
      %s31 = sadd.s32 1, %s26
      %p32 = scmp.ge.s32.totalorder %s31, 2
      %s33 = scalar_select %p32, 0, %s31
      %s34 = sadd.s32 1, %s25
      %s35 = scalar_select %p32, %s34, %s25
      %p36 = scmp.ge.s32.totalorder %s35, 2
      %s37 = scalar_select %p36, 0, %s35
      %s38 = ssub.s32 %s25, %s37
      %s39 = ssub.s32 %s26, %s33
      %s40 = sor.u32 %s38, %s39
      %p41 = scmp.eq.s32.totalorder %s40, 0
      %s43 = sadd.s32 %s42, 1
      %s44 = scalar_select %p41, %s42, %s43
      %p47 = pneg %p41
      %p48 = scmp.eq.s32.totalorder %s18, 3
      %p49 = por %p47, %p48
      %p50 = scmp.ne.s32.totalorder %s42, %s45
      %p51 = scmp.eq.s32.totalorder %s18, 0
      %p52 = por %p50, %p51
      %p53 = scmp.ne.s32.totalorder %s42, %s45
      %p54 = scmp.eq.s32.totalorder %s23, 3
      %p55 = por %p53, %p54
      %p56 = scmp.ne.s32.totalorder %s45, %s46
      %p57 = scmp.eq.s32.totalorder %s23, 0
      %p58 = por %p56, %p57
      %p59 = scmp.ne.s32.totalorder %s45, %s46
      %p60 = scmp.eq.s32.totalorder %s24, 3
      %p61 = por %p59, %p60
      %p63 = scmp.ne.s32.totalorder %s46, %s62
      %p64 = scmp.eq.s32.totalorder %s24, 0
      %p65 = por %p63, %p64
      %s67 = sadd.s32 %s66, 1
      %p70 = scmp.eq.s32.totalorder %s18, 3
      %p71 = scmp.ne.s32.totalorder %s66, %s68
      %p72 = scmp.eq.s32.totalorder %s18, 0
      %p73 = por %p71, %p72
      %p74 = scmp.ne.s32.totalorder %s66, %s68
      %p75 = scmp.eq.s32.totalorder %s23, 3
      %p76 = por %p74, %p75
      %p77 = scmp.ne.s32.totalorder %s68, %s69
      %p78 = scmp.eq.s32.totalorder %s23, 0
      %p79 = por %p77, %p78
      %p80 = scmp.ne.s32.totalorder %s68, %s69
      %p81 = scmp.eq.s32.totalorder %s24, 3
      %p82 = por %p80, %p81
      %p84 = scmp.ne.s32.totalorder %s69, %s83
      %p85 = scmp.eq.s32.totalorder %s24, 0
      %p86 = por %p84, %p85
      %s88 = sadd.s32 %s87, 1
      %p91 = scmp.eq.s32.totalorder %s18, 3
      %p92 = scmp.ne.s32.totalorder %s87, %s89
      %p93 = scmp.eq.s32.totalorder %s18, 0
      %p94 = por %p92, %p93
      %p95 = scmp.ne.s32.totalorder %s87, %s89
      %p96 = scmp.eq.s32.totalorder %s23, 3
      %p97 = por %p95, %p96
      %p98 = scmp.ne.s32.totalorder %s89, %s90
      %p99 = scmp.eq.s32.totalorder %s23, 0
      %p100 = por %p98, %p99
      %p101 = scmp.ne.s32.totalorder %s89, %s90
      %p102 = scmp.eq.s32.totalorder %s24, 3
      %p103 = por %p101, %p102
      %p105 = scmp.ne.s32.totalorder %s90, %s104
      %p106 = scmp.eq.s32.totalorder %s24, 0
      %p107 = por %p105, %p106
      %s109 = sadd.s32 %s108, 1
      %p112 = scmp.eq.s32.totalorder %s18, 3
      %p113 = scmp.ne.s32.totalorder %s108, %s110
      %p114 = scmp.eq.s32.totalorder %s18, 0
      %p115 = por %p113, %p114
      %p116 = scmp.ne.s32.totalorder %s108, %s110
      %p117 = scmp.eq.s32.totalorder %s23, 3
      %p118 = por %p116, %p117
      %p119 = scmp.ne.s32.totalorder %s110, %s111
      %p120 = scmp.eq.s32.totalorder %s23, 0
      %p121 = por %p119, %p120
      %p122 = scmp.ne.s32.totalorder %s110, %s111
      %p123 = scmp.eq.s32.totalorder %s24, 3
      %p124 = por %p122, %p123
      %p126 = scmp.ne.s32.totalorder %s111, %s125
      %p127 = scmp.eq.s32.totalorder %s24, 0
      %p128 = por %p126, %p127
      %s130 = sadd.s32 %s129, 1
      %p133 = scmp.eq.s32.totalorder %s18, 3
      %p134 = scmp.ne.s32.totalorder %s129, %s131
      %p135 = scmp.eq.s32.totalorder %s18, 0
      %p136 = por %p134, %p135
      %p137 = scmp.ne.s32.totalorder %s129, %s131
      %p138 = scmp.eq.s32.totalorder %s23, 3
      %p139 = por %p137, %p138
      %p140 = scmp.ne.s32.totalorder %s131, %s132
      %p141 = scmp.eq.s32.totalorder %s23, 0
      %p142 = por %p140, %p141
      %p143 = scmp.ne.s32.totalorder %s131, %s132
      %p144 = scmp.eq.s32.totalorder %s24, 3
      %p145 = por %p143, %p144
      %p147 = scmp.ne.s32.totalorder %s132, %s146
      %p148 = scmp.eq.s32.totalorder %s24, 0
      %p149 = por %p147, %p148
      %s150 = ssub.s32 %s25, %s37
      %p151 = scmp.eq.s32.totalorder %s150, 0
      %s153 = sadd.s32 %s152, 1
      %s154 = scalar_select %p151, %s152, %s153
      %p157 = pneg %p151
      %p158 = scmp.eq.s32.totalorder %s18, 3
      %p159 = por %p157, %p158
      %p160 = scmp.ne.s32.totalorder %s152, %s155
      %p161 = scmp.eq.s32.totalorder %s18, 0
      %p162 = por %p160, %p161
      %p163 = scmp.ne.s32.totalorder %s152, %s155
      %p164 = scmp.eq.s32.totalorder %s23, 3
      %p165 = por %p163, %p164
      %p166 = scmp.ne.s32.totalorder %s155, %s156
      %p167 = scmp.eq.s32.totalorder %s23, 0
      %p168 = por %p166, %p167
      %p169 = scmp.ne.s32.totalorder %s155, %s156
      %p170 = scmp.eq.s32.totalorder %s24, 3
      %p171 = por %p169, %p170
      %p173 = scmp.ne.s32.totalorder %s156, %s172
      %p174 = scmp.eq.s32.totalorder %s24, 0
      %p175 = por %p173, %p174
      %p176 = scmp.le.s32.totalorder 1, %s18
      %p177 = scmp.lt.s32.totalorder %s18, 5
      %p178 = pnand %p176, %p177
      %p179 = pneg %p178
      // Predicated region
      $region9: #{tpu_custom_call.1} parent=5 // pred_check
        _
      $region10: #{tpu_custom_call.1} parent=5 // pred_check_branch
        %181 = sbr.rel (%p178) target = $region12
      $region11: #{tpu_custom_call.1} parent=5 // pred_region
        %s182 = ssub.s32 %s18, 1
        // Predicated region
        $region13: #{tpu_custom_call.1} parent=11 // pred_check
          %p183 = pneg %p79
        $region14: #{tpu_custom_call.1} parent=11 // pred_check_branch
          %185 = sbr.rel (%p183) target = $region16
        $region15: #{tpu_custom_call.1} parent=11 // pred_region
          %s187 = ssub.s32 64, 64
          %188 = vsyncadd [#allocation7], %s187
          %s190 = sshll.u32 [#allocation6], 4
          %s191 = int_to_ptr.vmem [resolvable:$true] %s190
          %193 = dma.hbm_to_vmem [thread:$0]  %s1, 64, %s191, [#allocation7]
        $region16: #{tpu_custom_call.1} parent=11 // pred_fallthru
          _
        // Predicated region
        $region17: #{tpu_custom_call.1} parent=11 // pred_check
          %p194 = pneg %p100
        $region18: #{tpu_custom_call.1} parent=11 // pred_check_branch
          %196 = sbr.rel (%p194) target = $region20
        $region19: #{tpu_custom_call.1} parent=11 // pred_region
          _
        $region20: #{tpu_custom_call.1} parent=11 // pred_fallthru
          _
        // Predicated region
        $region21: #{tpu_custom_call.1} parent=11 // pred_check
          %p197 = pneg %p121
        $region22: #{tpu_custom_call.1} parent=11 // pred_check_branch
          %199 = sbr.rel (%p197) target = $region24
        $region23: #{tpu_custom_call.1} parent=11 // pred_region
          %s201 = ssub.s32 512, 512
          %202 = vsyncadd [#allocation7], %s201
          %s203 = sshll.u32 [#allocation8], 4
          %s204 = int_to_ptr.vmem [resolvable:$true] %s203
          %209 = dma.hbm_to_vmem [thread:$0]  %s3, 512, %s204, [#allocation7], 128, 128, 8
        $region24: #{tpu_custom_call.1} parent=11 // pred_fallthru
          _
        // Predicated region
        $region25: #{tpu_custom_call.1} parent=11 // pred_check
          %p210 = pneg %p142
        $region26: #{tpu_custom_call.1} parent=11 // pred_check_branch
          %212 = sbr.rel (%p210) target = $region28
        $region27: #{tpu_custom_call.1} parent=11 // pred_region
          _
        $region28: #{tpu_custom_call.1} parent=11 // pred_fallthru
          _
      $region12: #{tpu_custom_call.1} parent=5 // pred_fallthru
        _
      %p213 = scmp.lt.s32.totalorder %s18, 4
      // Predicated region
      $region29: #{tpu_custom_call.1} parent=5 // pred_check
        %p214 = pneg %p213
      $region30: #{tpu_custom_call.1} parent=5 // pred_check_branch
        %216 = sbr.rel (%p214) target = $region32
      $region31: #{tpu_custom_call.1} parent=5 // pred_region
        // Predicated region
        $region33: #{tpu_custom_call.1} parent=31 // pred_check
          %p217 = pneg %p52
        $region34: #{tpu_custom_call.1} parent=31 // pred_check_branch
          %219 = sbr.rel (%p217) target = $region36
        $region35: #{tpu_custom_call.1} parent=31 // pred_region
          %s220 = sand.u32 %s42, 1
          %s221 = scalar_lea.sflag [#allocation4], %s220
          %s222 = sand.u32 %s42, 1
          %s223 = smul.addr %s222, 4
          %s224 = scalar_lea.vmem [#allocation3], %s223
          %s226 = ssub.s32 64, 64
          %227 = vsyncadd %s221, %s226
          %s228 = smul.addr %s25, 2
          %s229 = sadd.s32 %s26, %s228
          %s230 = smul.addr %s229, 64
          %s231 = scalar_lea.hbm %s0, %s230
          %s233 = sshll.u32 %s224, 4
          %s234 = int_to_ptr.vmem [resolvable:$true] %s233
          %236 = dma.hbm_to_vmem [thread:$0]  %s231, 64, %s234, %s221
        $region36: #{tpu_custom_call.1} parent=31 // pred_fallthru
          _
      $region32: #{tpu_custom_call.1} parent=5 // pred_fallthru
        _
      %p237 = scmp.le.s32.totalorder 1, %s18
      %p238 = scmp.lt.s32.totalorder %s18, 5
      %p239 = pnand %p237, %p238
      %p240 = pneg %p239
      // Predicated region
      $region37: #{tpu_custom_call.1} parent=5 // pred_check
        _
      $region38: #{tpu_custom_call.1} parent=5 // pred_check_branch
        %242 = sbr.rel (%p239) target = $region40
      $region39: #{tpu_custom_call.1} parent=5 // pred_region
        %s243 = ssub.s32 %s18, 1
        %s244 = sand.u32 %s45, 1
        %s245 = scalar_lea.sflag [#allocation4], %s244
        %s246 = sand.u32 %s45, 1
        %s247 = smul.addr %s246, 4
        %s248 = scalar_lea.vmem [#allocation3], %s247
        // Predicated region
        $region41: #{tpu_custom_call.1} parent=39 // pred_check
          %p249 = pneg %p58
        $region42: #{tpu_custom_call.1} parent=39 // pred_check_branch
          %251 = sbr.rel (%p249) target = $region44
        $region43: #{tpu_custom_call.1} parent=39 // pred_region
          %252 = dma.done %s245, 64
        $region44: #{tpu_custom_call.1} parent=39 // pred_fallthru
          _
        // Predicated region
        $region45: #{tpu_custom_call.1} parent=39 // pred_check
          %p253 = pneg %p79
        $region46: #{tpu_custom_call.1} parent=39 // pred_check_branch
          %255 = sbr.rel (%p253) target = $region48
        $region47: #{tpu_custom_call.1} parent=39 // pred_region
          %256 = dma.done [#allocation7], 64
        $region48: #{tpu_custom_call.1} parent=39 // pred_fallthru
          _
        // Predicated region
        $region49: #{tpu_custom_call.1} parent=39 // pred_check
          %p257 = pneg %p121
        $region50: #{tpu_custom_call.1} parent=39 // pred_check_branch
          %259 = sbr.rel (%p257) target = $region52
        $region51: #{tpu_custom_call.1} parent=39 // pred_region
          %260 = dma.done [#allocation7], 512
        $region52: #{tpu_custom_call.1} parent=39 // pred_fallthru
          _
        %s261 = sand.u32 %s45, 1
        %s262 = scalar_lea.sflag [#allocation4], %s261
        %s263 = sand.u32 %s45, 1
        %s264 = smul.addr %s263, 4
        %s265 = scalar_lea.vmem [#allocation3], %s264
        %p266 = pneg %p58
        %p267 = pneg %p55
        %p268 = pneg %p79
        %p269 = pneg %p76
        %p270 = pneg %p100
        %p271 = pneg %p97
        %p272 = pneg %p121
        %p273 = pneg %p118
        %p274 = pneg %p142
        %p275 = pneg %p139
        %p276 = pneg %p168
        %p277 = pneg %p165
        %s278 = sand.u32 %s155, 1
        %s279 = scalar_lea.sflag [#allocation5], %s278
        %s280 = sand.u32 %s155, 1
        %s281 = scalar_lea.vmem [#allocation9], %s280
        %p282 = scmp.eq.s32.totalorder %s28, 0
        // Predicated region
        $region53: #{tpu_custom_call.1} parent=39 // pred_check
          %p283 = pneg %p282
        $region54: #{tpu_custom_call.1} parent=39 // pred_check_branch
          %285 = sbr.rel (%p283) target = $region56
        $region55: #{tpu_custom_call.1} parent=39 // pred_region
          %vm286 = vcmask 253952
          %287 = vst.msk [vmem:[#allocation2] sm:$0x1] %vm286, 0.0
        $region56: #{tpu_custom_call.1} parent=39 // pred_fallthru
          _
        %v288 = vld [vmem:[%s248] sm:$0xf]
        %v289 = vld [vmem:[#allocation6] sm:$0xf]
        %v290 = vld [vmem:[%s2] sm:$0x1]
        %v292 = vlaneseq
        %v293 = vshrl.u32 %v292, 7
        %v294 = vsub.s32 0, %v293
        %v295 = vrot.slane %v290, %v294
        %297 = vxpose.xlu0.b32.start [1/16] %v288, 128
        %298 = vxpose.xlu0.b32.cont [2/16] 0.0, 128
        %299 = vxpose.xlu0.b32.cont [3/16] 0.0, 128
        %300 = vxpose.xlu0.b32.cont [4/16] 0.0, 128
        %301 = vxpose.xlu0.b32.cont [5/16] 0.0, 128
        %302 = vxpose.xlu0.b32.cont [6/16] 0.0, 128
        %303 = vxpose.xlu0.b32.cont [7/16] 0.0, 128
        %304 = vxpose.xlu0.b32.cont [8/16] 0.0, 128
        %305 = vxpose.xlu0.b32.cont [9/16] 0.0, 128
        %306 = vxpose.xlu0.b32.cont [10/16] 0.0, 128
        %307 = vxpose.xlu0.b32.cont [11/16] 0.0, 128
        %308 = vxpose.xlu0.b32.cont [12/16] 0.0, 128
        %309 = vxpose.xlu0.b32.cont [13/16] 0.0, 128
        %310 = vxpose.xlu0.b32.cont [14/16] 0.0, 128
        %311 = vxpose.xlu0.b32.cont [15/16] 0.0, 128
        %312 = vxpose.xlu0.b32.end [16/16] 0.0, 128
        %v313 = vpop.trf.xlu0
        %v314 = vpop.trf.xlu0
        %v315 = vpop.trf.xlu0
        %v316 = vpop.trf.xlu0
        %v317 = vpop.trf.xlu0
        %v318 = vpop.trf.xlu0
        %v319 = vpop.trf.xlu0
        %v320 = vpop.trf.xlu0
        %v321 = vpop.trf.xlu0
        %v322 = vpop.trf.xlu0
        %v323 = vpop.trf.xlu0
        %v324 = vpop.trf.xlu0
        %v325 = vpop.trf.xlu0
        %v326 = vpop.trf.xlu0
        %v327 = vpop.trf.xlu0
        %v328 = vpop.trf.xlu0
        %vm329 = vcmask 31744
        %v331 = vsel %vm329, %v313, 0
        %v334 = vsel %vm329, %v314, 0
        %v337 = vsel %vm329, %v315, 0
        %v340 = vsel %vm329, %v316, 0
        %v343 = vsel %vm329, %v317, 0
        %v346 = vsel %vm329, %v318, 0
        %v349 = vsel %vm329, %v319, 0
        %v352 = vsel %vm329, %v320, 0
        %v355 = vsel %vm329, %v321, 0
        %v358 = vsel %vm329, %v322, 0
        %v361 = vsel %vm329, %v323, 0
        %v364 = vsel %vm329, %v324, 0
        %v367 = vsel %vm329, %v325, 0
        %v370 = vsel %vm329, %v326, 0
        %v373 = vsel %vm329, %v327, 0
        %v376 = vsel %vm329, %v328, 0
        %vm378 = vcmask 1043456
        %v380 = vsel %vm378, %v289, 0
        %382 = vmatprep.subr.mxu0 0.0
        %383 = vmatpush1.msra.mxu0 %v380
        %384 = vmatprep.subr.mxu0 0.0
        %385 = vmatpush1.msra.mxu0 0.0
        %386 = vmatprep.subr.mxu0 0.0
        %387 = vmatpush1.msra.mxu0 0.0
        %388 = vmatprep.subr.mxu0 0.0
        %389 = vmatpush1.msra.mxu0 0.0
        %390 = vmatprep.subr.mxu0 0.0
        %391 = vmatpush1.msra.mxu0 0.0
        %392 = vmatprep.subr.mxu0 0.0
        %393 = vmatpush1.msra.mxu0 0.0
        %394 = vmatprep.subr.mxu0 0.0
        %395 = vmatpush1.msra.mxu0 0.0
        %396 = vmatprep.subr.mxu0 0.0
        %397 = vmatpush1.msra.mxu0 0.0
        %398 = vmatprep.subr.mxu0 0.0
        %399 = vmatpush1.msra.mxu0 0.0
        %400 = vmatprep.subr.mxu0 0.0
        %401 = vmatpush1.msra.mxu0 0.0
        %402 = vmatprep.subr.mxu0 0.0
        %403 = vmatpush1.msra.mxu0 0.0
        %404 = vmatprep.subr.mxu0 0.0
        %405 = vmatpush1.msra.mxu0 0.0
        %406 = vmatprep.subr.mxu0 0.0
        %407 = vmatpush1.msra.mxu0 0.0
        %408 = vmatprep.subr.mxu0 0.0
        %409 = vmatpush1.msra.mxu0 0.0
        %410 = vmatprep.subr.mxu0 0.0
        %411 = vmatpush1.msra.mxu0 0.0
        %412 = vmatprep.subr.mxu0 0.0
        %413 = vmatpush1.msra.mxu0 0.0
        %414 = vmatprep.subr.mxu0 0.0
        %415 = vmatpush1.msra.mxu0 0.0
        %416 = vmatprep.subr.mxu0 0.0
        %417 = vmatpush1.msra.mxu0 0.0
        %418 = vmatprep.subr.mxu0 0.0
        %419 = vmatpush1.msra.mxu0 0.0
        %420 = vmatprep.subr.mxu0 0.0
        %421 = vmatpush1.msra.mxu0 0.0
        %422 = vmatprep.subr.mxu0 0.0
        %423 = vmatpush1.msra.mxu0 0.0
        %424 = vmatprep.subr.mxu0 0.0
        %425 = vmatpush1.msra.mxu0 0.0
        %426 = vmatprep.subr.mxu0 0.0
        %427 = vmatpush1.msra.mxu0 0.0
        %428 = vmatprep.subr.mxu0 0.0
        %429 = vmatpush1.msra.mxu0 0.0
        %430 = vmatprep.subr.mxu0 0.0
        %431 = vmatpush1.msra.mxu0 0.0
        %432 = vmatprep.subr.mxu0 0.0
        %433 = vmatpush1.msra.mxu0 0.0
        %434 = vmatprep.subr.mxu0 0.0
        %435 = vmatpush1.msra.mxu0 0.0
        %436 = vmatprep.subr.mxu0 0.0
        %437 = vmatpush1.msra.mxu0 0.0
        %438 = vmatprep.subr.mxu0 0.0
        %439 = vmatpush1.msra.mxu0 0.0
        %440 = vmatprep.subr.mxu0 0.0
        %441 = vmatpush1.msra.mxu0 0.0
        %442 = vmatprep.subr.mxu0 0.0
        %443 = vmatpush1.msra.mxu0 0.0
        %444 = vmatprep.subr.mxu0 0.0
        %445 = vmatpush1.msra.mxu0 0.0
        %446 = vmatprep.mubr.f32.mxu0 0.0
        %447 = vmatmul.mubr.f32.gmra.mrb[0].mxu0 %v331
        %v448 = vpop.f32.mrb[0].mxu0
        %v449 = vadd.f32 %v295, %v448
        %v450 = vpop.f32.mrb[0].mxu0
        %451 = vmatprep.mubr.f32.mxu0 0.0
        %452 = vmatmul.mubr.f32.gmra.mrb[0].mxu0 %v334
        %v453 = vpop.f32.mrb[0].mxu0
        %v454 = vadd.f32 %v295, %v453
        %v455 = vpop.f32.mrb[0].mxu0
        %456 = vmatprep.mubr.f32.mxu0 0.0
        %457 = vmatmul.mubr.f32.gmra.mrb[0].mxu0 %v337
        %v458 = vpop.f32.mrb[0].mxu0
        %v459 = vadd.f32 %v295, %v458
        %v460 = vpop.f32.mrb[0].mxu0
        %461 = vmatprep.mubr.f32.mxu0 0.0
        %462 = vmatmul.mubr.f32.gmra.mrb[0].mxu0 %v340
        %v463 = vpop.f32.mrb[0].mxu0
        %v464 = vadd.f32 %v295, %v463
        %v465 = vpop.f32.mrb[0].mxu0
        %466 = vmatprep.mubr.f32.mxu0 0.0
        %467 = vmatmul.mubr.f32.gmra.mrb[0].mxu0 %v343
        %v468 = vpop.f32.mrb[0].mxu0
        %v469 = vadd.f32 %v295, %v468
        %v470 = vpop.f32.mrb[0].mxu0
        %471 = vmatprep.mubr.f32.mxu0 0.0
        %472 = vmatmul.mubr.f32.gmra.mrb[0].mxu0 %v346
        %v473 = vpop.f32.mrb[0].mxu0
        %v474 = vadd.f32 %v295, %v473
        %v475 = vpop.f32.mrb[0].mxu0
        %476 = vmatprep.mubr.f32.mxu0 0.0
        %477 = vmatmul.mubr.f32.gmra.mrb[0].mxu0 %v349
        %v478 = vpop.f32.mrb[0].mxu0
        %v479 = vadd.f32 %v295, %v478
        %v480 = vpop.f32.mrb[0].mxu0
        %481 = vmatprep.mubr.f32.mxu0 0.0
        %482 = vmatmul.mubr.f32.gmra.mrb[0].mxu0 %v352
        %v483 = vpop.f32.mrb[0].mxu0
        %v484 = vadd.f32 %v295, %v483
        %v485 = vpop.f32.mrb[0].mxu0
        %486 = vmatprep.mubr.f32.mxu0 0.0
        %487 = vmatmul.mubr.f32.gmra.mrb[0].mxu0 %v355
        %v488 = vpop.f32.mrb[0].mxu0
        %v489 = vadd.f32 %v295, %v488
        %v490 = vpop.f32.mrb[0].mxu0
        %491 = vmatprep.mubr.f32.mxu0 0.0
        %492 = vmatmul.mubr.f32.gmra.mrb[0].mxu0 %v358
        %v493 = vpop.f32.mrb[0].mxu0
        %v494 = vadd.f32 %v295, %v493
        %v495 = vpop.f32.mrb[0].mxu0
        %496 = vmatprep.mubr.f32.mxu0 0.0
        %497 = vmatmul.mubr.f32.gmra.mrb[0].mxu0 %v361
        %v498 = vpop.f32.mrb[0].mxu0
        %v499 = vadd.f32 %v295, %v498
        %v500 = vpop.f32.mrb[0].mxu0
        %501 = vmatprep.mubr.f32.mxu0 0.0
        %502 = vmatmul.mubr.f32.gmra.mrb[0].mxu0 %v364
        %v503 = vpop.f32.mrb[0].mxu0
        %v504 = vadd.f32 %v295, %v503
        %v505 = vpop.f32.mrb[0].mxu0
        %506 = vmatprep.mubr.f32.mxu0 0.0
        %507 = vmatmul.mubr.f32.gmra.mrb[0].mxu0 %v367
        %v508 = vpop.f32.mrb[0].mxu0
        %v509 = vadd.f32 %v295, %v508
        %v510 = vpop.f32.mrb[0].mxu0
        %511 = vmatprep.mubr.f32.mxu0 0.0
        %512 = vmatmul.mubr.f32.gmra.mrb[0].mxu0 %v370
        %v513 = vpop.f32.mrb[0].mxu0
        %v514 = vadd.f32 %v295, %v513
        %v515 = vpop.f32.mrb[0].mxu0
        %516 = vmatprep.mubr.f32.mxu0 0.0
        %517 = vmatmul.mubr.f32.gmra.mrb[0].mxu0 %v373
        %v518 = vpop.f32.mrb[0].mxu0
        %v519 = vadd.f32 %v295, %v518
        %v520 = vpop.f32.mrb[0].mxu0
        %521 = vmatprep.mubr.f32.mxu0 0.0
        %522 = vmatmul.mubr.f32.gmra.mrb[0].mxu0 %v376
        %v523 = vpop.f32.mrb[0].mxu0
        %v524 = vadd.f32 %v295, %v523
        %v525 = vpop.f32.mrb[0].mxu0
        %526 = vdwg.mxu0
        %v527 = vmax.f32 %v449, 0.0
        %v528 = vmax.f32 %v454, 0.0
        %v529 = vmax.f32 %v459, 0.0
        %v530 = vmax.f32 %v464, 0.0
        %v531 = vmax.f32 %v469, 0.0
        %v532 = vmax.f32 %v474, 0.0
        %v533 = vmax.f32 %v479, 0.0
        %v534 = vmax.f32 %v484, 0.0
        %v535 = vmax.f32 %v489, 0.0
        %v536 = vmax.f32 %v494, 0.0
        %v537 = vmax.f32 %v499, 0.0
        %v538 = vmax.f32 %v504, 0.0
        %v539 = vmax.f32 %v509, 0.0
        %v540 = vmax.f32 %v514, 0.0
        %v541 = vmax.f32 %v519, 0.0
        %v542 = vmax.f32 %v524, 0.0
        %v543 = vld [vmem:[#allocation2] sm:$0x1]
        %vm544 = vcmask 261120
        %v545 = vsel %vm544, %v527, 0.0
        %v546 = vsel %vm544, %v528, 0.0
        %v547 = vadd.f32 %v545, %v546
        %v548 = vsel %vm544, %v529, 0.0
        %v549 = vadd.f32 %v547, %v548
        %v550 = vsel %vm544, %v530, 0.0
        %v551 = vadd.f32 %v549, %v550
        %v552 = vsel %vm544, %v531, 0.0
        %v553 = vadd.f32 %v551, %v552
        %v554 = vsel %vm544, %v532, 0.0
        %v555 = vadd.f32 %v553, %v554
        %v556 = vsel %vm544, %v533, 0.0
        %v557 = vadd.f32 %v555, %v556
        %v558 = vsel %vm544, %v534, 0.0
        %v559 = vadd.f32 %v557, %v558
        %v560 = vsel %vm544, %v535, 0.0
        %v561 = vadd.f32 %v559, %v560
        %v562 = vsel %vm544, %v536, 0.0
        %v563 = vadd.f32 %v561, %v562
        %v564 = vsel %vm544, %v537, 0.0
        %v565 = vadd.f32 %v563, %v564
        %v566 = vsel %vm544, %v538, 0.0
        %v567 = vadd.f32 %v565, %v566
        %v568 = vsel %vm544, %v539, 0.0
        %v569 = vadd.f32 %v567, %v568
        %v570 = vsel %vm544, %v540, 0.0
        %v571 = vadd.f32 %v569, %v570
        %v572 = vsel %vm544, %v541, 0.0
        %v573 = vadd.f32 %v571, %v572
        %v574 = vsel %vm544, %v542, 0.0
        %v575 = vadd.f32 %v573, %v574
        %v576 = vrot.slane %v575, 4
        %v577 = vadd.f32 %v575, %v576
        %v578 = vrot.slane %v577, 2
        %v579 = vadd.f32 %v577, %v578
        %v580 = vrot.slane %v579, 1
        %v581 = vadd.f32 %v579, %v580
        %v582 = vadd.f32 %v543, %v581
        %vm583 = vcmask 253952
        %584 = vst.msk [vmem:[#allocation2] sm:$0x1] %vm583, %v582
        %p585 = scmp.eq.s32.totalorder %s28, 1
        // Predicated region
        $region57: #{tpu_custom_call.1} parent=39 // pred_check
          %p586 = pneg %p585
        $region58: #{tpu_custom_call.1} parent=39 // pred_check_branch
          %588 = sbr.rel (%p586) target = $region60
        $region59: #{tpu_custom_call.1} parent=39 // pred_region
          %v589 = vld [vmem:[#allocation2] sm:$0x1]
          %v590 = vld [vmem:[#allocation8] sm:$0xff]
          %v591 = vld [vmem:[#allocation8 + $0x8] sm:$0xff]
          %v592 = vld [vmem:[#allocation8 + $0x10] sm:$0xff]
          %v593 = vld [vmem:[#allocation8 + $0x18] sm:$0xff]
          %v594 = vld [vmem:[%s4] sm:$0x1]
          %v596 = vsel %vm544, %v589, 0
          %598 = vmatprep.subr.mxu0 0.0
          %599 = vmatpush1.msra.mxu0 %v590
          %600 = vmatprep.subr.mxu0 0.0
          %601 = vmatpush1.msra.mxu0 %v591
          %602 = vmatprep.subr.mxu0 0.0
          %603 = vmatpush1.msra.mxu0 %v592
          %604 = vmatprep.subr.mxu0 0.0
          %605 = vmatpush1.msra.mxu0 %v593
          %606 = vmatprep.subr.mxu0 0.0
          %607 = vmatpush1.msra.mxu0 0.0
          %608 = vmatprep.subr.mxu0 0.0
          %609 = vmatpush1.msra.mxu0 0.0
          %610 = vmatprep.subr.mxu0 0.0
          %611 = vmatpush1.msra.mxu0 0.0
          %612 = vmatprep.subr.mxu0 0.0
          %613 = vmatpush1.msra.mxu0 0.0
          %614 = vmatprep.subr.mxu0 0.0
          %615 = vmatpush1.msra.mxu0 0.0
          %616 = vmatprep.subr.mxu0 0.0
          %617 = vmatpush1.msra.mxu0 0.0
          %618 = vmatprep.subr.mxu0 0.0
          %619 = vmatpush1.msra.mxu0 0.0
          %620 = vmatprep.subr.mxu0 0.0
          %621 = vmatpush1.msra.mxu0 0.0
          %622 = vmatprep.subr.mxu0 0.0
          %623 = vmatpush1.msra.mxu0 0.0
          %624 = vmatprep.subr.mxu0 0.0
          %625 = vmatpush1.msra.mxu0 0.0
          %626 = vmatprep.subr.mxu0 0.0
          %627 = vmatpush1.msra.mxu0 0.0
          %628 = vmatprep.subr.mxu0 0.0
          %629 = vmatpush1.msra.mxu0 0.0
          %630 = vmatprep.subr.mxu0 0.0
          %631 = vmatpush1.msra.mxu0 0.0
          %632 = vmatprep.subr.mxu0 0.0
          %633 = vmatpush1.msra.mxu0 0.0
          %634 = vmatprep.subr.mxu0 0.0
          %635 = vmatpush1.msra.mxu0 0.0
          %636 = vmatprep.subr.mxu0 0.0
          %637 = vmatpush1.msra.mxu0 0.0
          %638 = vmatprep.subr.mxu0 0.0
          %639 = vmatpush1.msra.mxu0 0.0
          %640 = vmatprep.subr.mxu0 0.0
          %641 = vmatpush1.msra.mxu0 0.0
          %642 = vmatprep.subr.mxu0 0.0
          %643 = vmatpush1.msra.mxu0 0.0
          %644 = vmatprep.subr.mxu0 0.0
          %645 = vmatpush1.msra.mxu0 0.0
          %646 = vmatprep.subr.mxu0 0.0
          %647 = vmatpush1.msra.mxu0 0.0
          %648 = vmatprep.subr.mxu0 0.0
          %649 = vmatpush1.msra.mxu0 0.0
          %650 = vmatprep.subr.mxu0 0.0
          %651 = vmatpush1.msra.mxu0 0.0
          %652 = vmatprep.subr.mxu0 0.0
          %653 = vmatpush1.msra.mxu0 0.0
          %654 = vmatprep.subr.mxu0 0.0
          %655 = vmatpush1.msra.mxu0 0.0
          %656 = vmatprep.subr.mxu0 0.0
          %657 = vmatpush1.msra.mxu0 0.0
          %658 = vmatprep.subr.mxu0 0.0
          %659 = vmatpush1.msra.mxu0 0.0
          %660 = vmatprep.subr.mxu0 0.0
          %661 = vmatpush1.msra.mxu0 0.0
          %662 = vmatprep.mubr.f32.mxu0 0.0
          %663 = vmatmul.mubr.f32.gmra.mrb[0].mxu0 %v596
          %v664 = vpop.f32.mrb[0].mxu0
          %v665 = vadd.f32 %v594, %v664
          %v666 = vpop.f32.mrb[0].mxu0
          %667 = vdwg.mxu0
          %668 = vst [vmem:[%s281] sm:$0x1] %v665
        $region60: #{tpu_custom_call.1} parent=39 // pred_fallthru
          _
        %s669 = sand.u32 %s155, 1
        %s670 = scalar_lea.sflag [#allocation5], %s669
        %s671 = sand.u32 %s155, 1
        %s672 = scalar_lea.vmem [#allocation9], %s671
        // Predicated region
        $region61: #{tpu_custom_call.1} parent=39 // pred_check
          %p673 = pneg %p165
        $region62: #{tpu_custom_call.1} parent=39 // pred_check_branch
          %675 = sbr.rel (%p673) target = $region64
        $region63: #{tpu_custom_call.1} parent=39 // pred_region
          %s677 = ssub.s32 16, 16
          %678 = vsyncadd %s670, %s677
          %s679 = smul.addr %s27, 16
          %s680 = scalar_lea.hbm %s5, %s679
          %s682 = sshll.u32 %s672, 4
          %s683 = int_to_ptr.vmem [resolvable:$true] %s682
          %685 = dma.vmem_to_hbm [thread:$0]  %s683, 16, %s680, %s670
        $region64: #{tpu_custom_call.1} parent=39 // pred_fallthru
          _
      $region40: #{tpu_custom_call.1} parent=5 // pred_fallthru
        _
      %p686 = scmp.le.s32.totalorder 2, %s18
      // Predicated region
      $region65: #{tpu_custom_call.1} parent=5 // pred_check
        %p687 = pneg %p686
      $region66: #{tpu_custom_call.1} parent=5 // pred_check_branch
        %689 = sbr.rel (%p687) target = $region68
      $region67: #{tpu_custom_call.1} parent=5 // pred_region
        %s690 = ssub.s32 %s18, 2
        // Predicated region
        $region69: #{tpu_custom_call.1} parent=67 // pred_check
          %p691 = pneg %p171
        $region70: #{tpu_custom_call.1} parent=67 // pred_check_branch
          %693 = sbr.rel (%p691) target = $region72
        $region71: #{tpu_custom_call.1} parent=67 // pred_region
          %s694 = sand.u32 %s156, 1
          %s695 = scalar_lea.sflag [#allocation5], %s694
          %s696 = sand.u32 %s156, 1
          %s697 = scalar_lea.vmem [#allocation9], %s696
          %698 = dma.done %s695, 16
        $region72: #{tpu_custom_call.1} parent=67 // pred_fallthru
          _
      $region68: #{tpu_custom_call.1} parent=5 // pred_fallthru
        _
    $region6: #{tpu_custom_call.1} parent=1 // loop_footer
      %s22 = sadd.s32 1, %s18
    $region7: #{tpu_custom_call.1} parent=1 // loop_footer_branch
      %17 = sbr.rel target = $region3
    $region8: #{tpu_custom_call.1} parent=1 // loop_exit
      _
    %699 = vsyncpa [#allocation4], 1
    %s700 = scalar_lea.sflag [#allocation4], 1
    %701 = vsyncpa %s700, 1
    %702 = vsyncpa [#allocation7], 1
    %703 = vsyncpa [#allocation5], 1
    %s704 = scalar_lea.sflag [#allocation5], 1
    %705 = vsyncpa %s704, 1

</llo_original>
